<compile_context>
chip_gen: v5e
topology: v5e:2x2
jax: 0.10.0
libtpu: 0.0.40
codegen_flags: <defaults>
</compile_context>

<pallas_src>
import functools

import jax
import jax.numpy as jnp
from jax.experimental import pallas as pl
from jax.experimental.pallas import tpu as pltpu


# ----------------------------------------------------------------------------
# Pallas kernel: fused 4-way unpool conv, depth-to-space fused into the store
# ----------------------------------------------------------------------------
def _fused_unpool_conv_kernel(x_ref, w_ref, b_ref, o_ref, *, th, wo, cin,
                              use_im2col):
    """One (batch, row-tile) grid step.

    x_ref: (1, 1, th+2, wo+2, cin)   halo-padded NHWC input row-tile
    w_ref: (2, 9*cin, 2*planes)      r=0 -> [A|C] taps, r=1 -> [B|D] taps
    b_ref: (2, 1, 2*planes)          biases, same grouping (f32)
    o_ref: (1, th, 2, wo, 2*planes)  (i, r, j, c*planes+p) == y[2i+r, 2j+c, p]
    """
    cout2 = w_ref.shape[-1]
    # 9 shifted taps of the padded tile; cast each tap to the MXU operand
    # dtype (no-op when the activations were already cast on the host).
    taps = []
    for dh in range(3):
        for dw in range(3):
            taps.append(
                x_ref[0, 0, dh:dh + th, dw:dw + wo, :]
                .reshape(th * wo, cin).astype(w_ref.dtype))

    if use_im2col:
        # Small cin: one K = 9*cin matmul keeps the MXU contraction dim full.
        patches = jnp.concatenate(taps, axis=-1)          # (th*wo, 9*cin)

    for r in range(2):                                     # output row parity
        if use_im2col:
            acc = jnp.dot(patches, w_ref[r],
                          preferred_element_type=jnp.float32)
        else:
            # Large cin (>=256): per-tap matmuls already fill the MXU depth;
            # skip the 9x im2col buffer (dominant VMEM user on v7x).
            acc = jnp.zeros((th * wo, cout2), jnp.float32)
            for t in range(9):
                acc = acc + jnp.dot(
                    taps[t], w_ref[r, t * cin:(t + 1) * cin, :],
                    preferred_element_type=jnp.float32)
        acc = acc + b_ref[r].astype(jnp.float32)           # fused bias epilogue
        # Store directly into the depth-to-space layout (no XLA transpose).
        o_ref[0, :, r, :, :] = acc.reshape(th, wo, cout2).astype(o_ref.dtype)


# ----------------------------------------------------------------------------
# Tile-size heuristic (per-generation VMEM budget)
# ----------------------------------------------------------------------------
def _pick_row_tile(h, w, cin, planes, in_itemsize, out_itemsize, use_im2col,
                   vmem_budget_bytes):
    divisors = [d for d in range(1, h + 1) if h % d == 0]
    # Prefer >= 2 row tiles so the spatial axis can feed a second TensorCore
    # (v7x) and give the software pipeline some depth even at batch 1.
    candidates = [d for d in divisors if d < h] or divisors
    for th in sorted(candidates, reverse=True):
        in_blk = (th + 2) * (w + 2) * cin * in_itemsize            # input tile
        out_blk = th * 2 * w * 2 * planes * out_itemsize           # output tile
        acc_buf = th * w * 2 * planes * 4                          # f32 accum
        im2col_buf = 9 * th * w * cin * in_itemsize if use_im2col else 0
        w_bytes = 2 * 9 * cin * 2 * planes * in_itemsize           # weights
        need = 2 * in_blk + 2 * out_blk + acc_buf + im2col_buf + w_bytes
        if need <= vmem_budget_bytes:
            return th
    return min(candidates)


# ----------------------------------------------------------------------------
# pallas_call wrapper
# ----------------------------------------------------------------------------
def _fused_unpool_conv(x_nhwc, w3d, bias, *, out_dtype=jnp.float32,
                       row_tile=None, im2col=None,
                       vmem_limit_bytes=64 * 1024 * 1024):
    """Returns (N, H, 2, W, 2*planes) so (N, 2H, 2W, planes) is a free reshape."""
    n, h, w, cin = x_nhwc.shape
    cout2 = w3d.shape[-1]                       # 2 * planes
    planes = cout2 // 2
    compute_dtype = w3d.dtype
    # Activations follow the weight dtype -> bf16 input DMA on the bf16 path.
    x_nhwc = x_nhwc.astype(compute_dtype)

    if im2col is None:
        # v6e/v7x MXU contraction depth is 256: per-tap matmuls with cin >= 256
        # already fill it, so drop the 9x patch buffer there.
        im2col = cin < 256
    if row_tile is None:
        row_tile = _pick_row_tile(
            h, w, cin, planes,
            jnp.dtype(compute_dtype).itemsize, jnp.dtype(out_dtype).itemsize,
            im2col, int(0.7 * vmem_limit_bytes))
    th = row_tile
    assert h % th == 0, (h, th)
    num_tiles = h // th

    # Host-side halo tiling: one superset pad ((1,1),(1,1)) + overlapping row
    # windows -> every operand keeps a plain Blocked BlockSpec and the whole
    # pipeline is auto double-buffered.
    # TODO(synk): fold the pad + halo into an in-kernel DMA to drop this copy.
    xp = jnp.pad(x_nhwc, ((0, 0), (1, 1), (1, 1), (0, 0)))
    x_tiles = jnp.stack(
        [xp[:, t * th:t * th + th + 2] for t in range(num_tiles)], axis=1)
    wp = w + 2                                   # padded width

    kernel = functools.partial(_fused_unpool_conv_kernel,
                               th=th, wo=w, cin=cin, use_im2col=im2col)

    flops = 2 * n * h * w * 9 * cin * 2 * cout2
    bytes_accessed = (x_tiles.size * x_tiles.dtype.itemsize
                      + w3d.size * w3d.dtype.itemsize
                      + bias.size * bias.dtype.itemsize
                      + n * h * 2 * w * cout2 * jnp.dtype(out_dtype).itemsize)

    return pl.pallas_call(
        kernel,
        out_shape=jax.ShapeDtypeStruct((n, h, 2, w, cout2), out_dtype),
        grid=(n, num_tiles),
        in_specs=[
            pl.BlockSpec((1, 1, th + 2, wp, cin), lambda b, t: (b, t, 0, 0, 0)),
            pl.BlockSpec((2, 9 * cin, cout2), lambda b, t: (0, 0, 0)),
            pl.BlockSpec((2, 1, cout2), lambda b, t: (0, 0, 0)),
        ],
        out_specs=pl.BlockSpec((1, th, 2, w, cout2),
                               lambda b, t: (b, t, 0, 0, 0)),
        compiler_params=pltpu.CompilerParams(
            dimension_semantics=("parallel", "parallel"),
            vmem_limit_bytes=vmem_limit_bytes),
        cost_estimate=pl.CostEstimate(flops=flops, transcendentals=0,
                                      bytes_accessed=bytes_accessed),
    )(x_tiles, w3d, bias)


# ----------------------------------------------------------------------------
# Host-side weight fusion (one-time parameter setup, including dtype cast)
# ----------------------------------------------------------------------------
def build_fused_unpool_params(conv_params, *, compute_dtype=jnp.float32):
    """Fold the 4 conv weights (torch OIHW) + biases into one fused tensor.

    Output w3d: (2, 9*cin, 2*planes); row-group r and col-group c map to the
    output pixel offset (r, c) of the 2x interleave:
        (0,0)=A   (0,1)=C   (1,0)=B   (1,1)=D
    B/C/D filters are zero-padded to 3x3 taps so a single 3x3 VALID conv over
    x padded by ((1,1),(1,1)) reproduces all four asymmetric pads.
    """
    wA, bA = conv_params["A"]
    wB, bB = conv_params["B"]
    wC, bC = conv_params["C"]
    wD, bD = conv_params["D"]
    planes, cin = wA.shape[0], wA.shape[1]

    def hwio(wt):                                 # OIHW -> HWIO
        return jnp.transpose(wt, (2, 3, 1, 0))

    wbig = jnp.zeros((3, 3, cin, 2, 2, planes), jnp.float32)   # (dh,dw,ci,r,c,o)
    wbig = wbig.at[:, :, :, 0, 0, :].set(hwio(wA))       # A: full 3x3
    wbig = wbig.at[:, 1:3, :, 0, 1, :].set(hwio(wC))     # C: cols 1..2
    wbig = wbig.at[1:3, :, :, 1, 0, :].set(hwio(wB))     # B: rows 1..2
    wbig = wbig.at[1:3, 1:3, :, 1, 1, :].set(hwio(wD))   # D: rows/cols 1..2
    w3d = wbig.reshape(9 * cin, 2, 2 * planes).transpose(1, 0, 2)
    bias = jnp.stack([jnp.concatenate([bA, bC]),
                      jnp.concatenate([bB, bD])])[:, None, :]
    return w3d.astype(compute_dtype), bias.astype(jnp.float32)


# ----------------------------------------------------------------------------
# Forward wrappers (match the PyTorch module semantics)
# ----------------------------------------------------------------------------
def unpooling_as_convolution(x_nchw, w3d, bias, *, out_dtype=jnp.float32,
                             row_tile=None, im2col=None,
                             vmem_limit_bytes=64 * 1024 * 1024):
    """NCHW in -> NCHW out, spatial 2x upsample (same as the torch module)."""
    n, _, h, w = x_nchw.shape
    planes = w3d.shape[-1] // 2
    x_nhwc = jnp.transpose(x_nchw, (0, 2, 3, 1))
    out5 = _fused_unpool_conv(x_nhwc, w3d, bias, out_dtype=out_dtype,
                              row_tile=row_tile, im2col=im2col,
                              vmem_limit_bytes=vmem_limit_bytes)
    # Depth-to-space is already done by the store layout; only NHWC->NCHW left.
    y = out5.reshape(n, h, 2, w, 2, planes)
    y = jnp.transpose(y, (0, 5, 1, 2, 3, 4)).reshape(n, planes, 2 * h, 2 * w)
    return y


def unpooling_as_convolution_nhwc(x_nhwc, w3d, bias, *, out_dtype=jnp.float32,
                                  row_tile=None, im2col=None,
                                  vmem_limit_bytes=64 * 1024 * 1024):
    """NHWC in -> NHWC out; transpose-free (preferred for chained decoders)."""
    n, h, w, _ = x_nhwc.shape
    planes = w3d.shape[-1] // 2
    out5 = _fused_unpool_conv(x_nhwc, w3d, bias, out_dtype=out_dtype,
                              row_tile=row_tile, im2col=im2col,
                              vmem_limit_bytes=vmem_limit_bytes)
    return out5.reshape(n, 2 * h, 2 * w, planes)     # free contiguous reshape


# ----------------------------------------------------------------------------
# Pure-JAX reference (faithful transcription of the torch forward)
# ----------------------------------------------------------------------------
def _interleave(tensors, axis):
    stacked = jnp.stack(tensors, axis=axis + 1)
    shape = list(tensors[0].shape)
    shape[axis] *= len(tensors)
    return stacked.reshape(shape)


def ref_unpooling_as_convolution(x_nchw, conv_params):
    def conv(x, wt, b, padding):
        y = jax.lax.conv_general_dilated(
            x, wt, window_strides=(1, 1), padding=padding,
            dimension_numbers=("NCHW", "OIHW", "NCHW"))
        return y + b.reshape(1, -1, 1, 1)

    wA, bA = conv_params["A"]
    wB, bB = conv_params["B"]
    wC, bC = conv_params["C"]
    wD, bD = conv_params["D"]
    out_a = conv(x_nchw, wA, bA, ((1, 1), (1, 1)))
    xb = jnp.pad(x_nchw, ((0, 0), (0, 0), (0, 1), (1, 1)))   # F.pad(x,(1,1,0,1))
    out_b = conv(xb, wB, bB, ((0, 0), (0, 0)))
    xc = jnp.pad(x_nchw, ((0, 0), (0, 0), (1, 1), (0, 1)))   # F.pad(x,(0,1,1,1))
    out_c = conv(xc, wC, bC, ((0, 0), (0, 0)))
    xd = jnp.pad(x_nchw, ((0, 0), (0, 0), (0, 1), (0, 1)))   # F.pad(x,(0,1,0,1))
    out_d = conv(xd, wD, bD, ((0, 0), (0, 0)))
    left = _interleave([out_a, out_b], axis=2)
    right = _interleave([out_c, out_d], axis=2)
    return _interleave([left, right], axis=3)


# ----------------------------------------------------------------------------
# Deterministic parameter init (torch Conv2d default: U(-1/sqrt(fan_in), +))
# ----------------------------------------------------------------------------
def _init_conv(key, cout, cin, kh, kw):
    kw_key, kb_key = jax.random.split(key)
    bound = 1.0 / ((cin * kh * kw) ** 0.5)
    wt = jax.random.uniform(kw_key, (cout, cin, kh, kw), jnp.float32,
                            -bound, bound)
    b = jax.random.uniform(kb_key, (cout,), jnp.float32, -bound, bound)
    return wt, b


def init_unpool_params(key, inplanes, planes):
    kernels = {"A": (3, 3), "B": (2, 3), "C": (3, 2), "D": (2, 2)}
    keys = jax.random.split(key, 4)
    return {name: _init_conv(k, planes, inplanes, *kernels[name])
            for name, k in zip(("A", "B", "C", "D"), keys)}


# ----------------------------------------------------------------------------
if __name__ == "__main__":
    N, C_IN, PLANES, H, W = 2, 4, 8, 16, 16

    root = jax.random.PRNGKey(0)
    k_x, k_p = jax.random.split(root)
    x = jax.random.normal(k_x, (N, C_IN, H, W), jnp.float32)    # NCHW input
    conv_params = init_unpool_params(k_p, C_IN, PLANES)
    ref = jax.block_until_ready(ref_unpooling_as_convolution(x, conv_params))

    # --- f32 path, im2col matmul, NCHW wrapper (exact check) ---------------
    w3d, bias = build_fused_unpool_params(conv_params,
                                          compute_dtype=jnp.float32)
    out = jax.block_until_ready(jax.jit(unpooling_as_convolution)(x, w3d, bias))
    assert out.shape == (N, PLANES, 2 * H, 2 * W), out.shape
    err = float(jnp.max(jnp.abs(out - ref)))
    assert jnp.allclose(out, ref, rtol=1e-4, atol=1e-4), err

    # --- f32 path, 9-tap accumulation loop (v7x large-cin path), NHWC ------
    x_nhwc = jnp.transpose(x, (0, 2, 3, 1))
    ref_nhwc = jnp.transpose(ref, (0, 2, 3, 1))
    fwd_tap = jax.jit(functools.partial(unpooling_as_convolution_nhwc,
                                        im2col=False))
    out_tap = jax.block_until_ready(fwd_tap(x_nhwc, w3d, bias))
    assert out_tap.shape == (N, 2 * H, 2 * W, PLANES), out_tap.shape
    err_tap = float(jnp.max(jnp.abs(out_tap - ref_nhwc)))
    assert jnp.allclose(out_tap, ref_nhwc, rtol=1e-4, atol=1e-4), err_tap

    # --- bf16 activations/weights/output, f32 MXU accumulation -------------
    w3d_bf, bias_bf = build_fused_unpool_params(conv_params,
                                                compute_dtype=jnp.bfloat16)
    fwd_bf = jax.jit(functools.partial(unpooling_as_convolution,
                                       out_dtype=jnp.bfloat16))
    out_bf = jax.block_until_ready(fwd_bf(x, w3d_bf, bias_bf))
    err_bf = float(jnp.max(jnp.abs(out_bf.astype(jnp.float32) - ref)))
    assert jnp.allclose(out_bf.astype(jnp.float32), ref,
                        rtol=5e-2, atol=5e-2), err_bf

    print("KERNEL_OK")
</pallas_src>

<mosaic_0001>
module attributes {stable_mosaic.version = 11 : i64} {
  func.func @_fused_unpool_conv_kernel(%arg0: i32, %arg1: i32, %arg2: memref<1x1x10x18x4xf32, #tpu.memory_space<vmem>>, %arg3: memref<2x36x16xf32, #tpu.memory_space<vmem>>, %arg4: memref<2x1x16xf32, #tpu.memory_space<vmem>>, %arg5: memref<1x8x2x16x16xf32, #tpu.memory_space<vmem>>) attributes {dimension_semantics = [#tpu.dimension_semantics<parallel>, #tpu.dimension_semantics<parallel>], iteration_bounds = array<i64: 2, 2>, scalar_prefetch = 0 : i64, scratch_operands = 0 : i64, tpu.core_type = #tpu.core_type<tc>, window_params = [{transform_indices = @transform_0, window_bounds = array<i64: 1, 1, 10, 18, 4>}, {pipeline_mode = #tpu.pipeline_mode<synchronous>, transform_indices = @transform_1, window_bounds = array<i64: 2, 36, 16>}, {pipeline_mode = #tpu.pipeline_mode<synchronous>, transform_indices = @transform_2, window_bounds = array<i64: 2, 1, 16>}, {transform_indices = @transform_3, window_bounds = array<i64: 1, 8, 2, 16, 16>}]} {
    %c0 = arith.constant 0 : index
    %c0_0 = arith.constant 0 : index
    %c0_1 = arith.constant 0 : index
    %c0_2 = arith.constant 0 : index
    %c0_3 = arith.constant 0 : index
    %0 = vector.load %arg2[%c0, %c0_0, %c0_1, %c0_2, %c0_3] : memref<1x1x10x18x4xf32, #tpu.memory_space<vmem>>, vector<1x1x8x16x4xf32>
    %1 = vector.shape_cast %0 : vector<1x1x8x16x4xf32> to vector<8x16x4xf32>
    %2 = vector.shape_cast %1 : vector<8x16x4xf32> to vector<128x4xf32>
    %c0_4 = arith.constant 0 : index
    %c0_5 = arith.constant 0 : index
    %c0_6 = arith.constant 0 : index
    %c1 = arith.constant 1 : index
    %c0_7 = arith.constant 0 : index
    %3 = vector.load %arg2[%c0_4, %c0_5, %c0_6, %c1, %c0_7] : memref<1x1x10x18x4xf32, #tpu.memory_space<vmem>>, vector<1x1x8x16x4xf32>
    %4 = vector.shape_cast %3 : vector<1x1x8x16x4xf32> to vector<8x16x4xf32>
    %5 = vector.shape_cast %4 : vector<8x16x4xf32> to vector<128x4xf32>
    %c0_8 = arith.constant 0 : index
    %c0_9 = arith.constant 0 : index
    %c0_10 = arith.constant 0 : index
    %c2 = arith.constant 2 : index
    %c0_11 = arith.constant 0 : index
    %6 = vector.load %arg2[%c0_8, %c0_9, %c0_10, %c2, %c0_11] : memref<1x1x10x18x4xf32, #tpu.memory_space<vmem>>, vector<1x1x8x16x4xf32>
    %7 = vector.shape_cast %6 : vector<1x1x8x16x4xf32> to vector<8x16x4xf32>
    %8 = vector.shape_cast %7 : vector<8x16x4xf32> to vector<128x4xf32>
    %c0_12 = arith.constant 0 : index
    %c0_13 = arith.constant 0 : index
    %c1_14 = arith.constant 1 : index
    %c0_15 = arith.constant 0 : index
    %c0_16 = arith.constant 0 : index
    %9 = vector.load %arg2[%c0_12, %c0_13, %c1_14, %c0_15, %c0_16] : memref<1x1x10x18x4xf32, #tpu.memory_space<vmem>>, vector<1x1x8x16x4xf32>
    %10 = vector.shape_cast %9 : vector<1x1x8x16x4xf32> to vector<8x16x4xf32>
    %11 = vector.shape_cast %10 : vector<8x16x4xf32> to vector<128x4xf32>
    %c0_17 = arith.constant 0 : index
    %c0_18 = arith.constant 0 : index
    %c1_19 = arith.constant 1 : index
    %c1_20 = arith.constant 1 : index
    %c0_21 = arith.constant 0 : index
    %12 = vector.load %arg2[%c0_17, %c0_18, %c1_19, %c1_20, %c0_21] : memref<1x1x10x18x4xf32, #tpu.memory_space<vmem>>, vector<1x1x8x16x4xf32>
    %13 = vector.shape_cast %12 : vector<1x1x8x16x4xf32> to vector<8x16x4xf32>
    %14 = vector.shape_cast %13 : vector<8x16x4xf32> to vector<128x4xf32>
    %c0_22 = arith.constant 0 : index
    %c0_23 = arith.constant 0 : index
    %c1_24 = arith.constant 1 : index
    %c2_25 = arith.constant 2 : index
    %c0_26 = arith.constant 0 : index
    %15 = vector.load %arg2[%c0_22, %c0_23, %c1_24, %c2_25, %c0_26] : memref<1x1x10x18x4xf32, #tpu.memory_space<vmem>>, vector<1x1x8x16x4xf32>
    %16 = vector.shape_cast %15 : vector<1x1x8x16x4xf32> to vector<8x16x4xf32>
    %17 = vector.shape_cast %16 : vector<8x16x4xf32> to vector<128x4xf32>
    %c0_27 = arith.constant 0 : index
    %c0_28 = arith.constant 0 : index
    %c2_29 = arith.constant 2 : index
    %c0_30 = arith.constant 0 : index
    %c0_31 = arith.constant 0 : index
    %18 = vector.load %arg2[%c0_27, %c0_28, %c2_29, %c0_30, %c0_31] : memref<1x1x10x18x4xf32, #tpu.memory_space<vmem>>, vector<1x1x8x16x4xf32>
    %19 = vector.shape_cast %18 : vector<1x1x8x16x4xf32> to vector<8x16x4xf32>
    %20 = vector.shape_cast %19 : vector<8x16x4xf32> to vector<128x4xf32>
    %c0_32 = arith.constant 0 : index
    %c0_33 = arith.constant 0 : index
    %c2_34 = arith.constant 2 : index
    %c1_35 = arith.constant 1 : index
    %c0_36 = arith.constant 0 : index
    %21 = vector.load %arg2[%c0_32, %c0_33, %c2_34, %c1_35, %c0_36] : memref<1x1x10x18x4xf32, #tpu.memory_space<vmem>>, vector<1x1x8x16x4xf32>
    %22 = vector.shape_cast %21 : vector<1x1x8x16x4xf32> to vector<8x16x4xf32>
    %23 = vector.shape_cast %22 : vector<8x16x4xf32> to vector<128x4xf32>
    %c0_37 = arith.constant 0 : index
    %c0_38 = arith.constant 0 : index
    %c2_39 = arith.constant 2 : index
    %c2_40 = arith.constant 2 : index
    %c0_41 = arith.constant 0 : index
    %24 = vector.load %arg2[%c0_37, %c0_38, %c2_39, %c2_40, %c0_41] : memref<1x1x10x18x4xf32, #tpu.memory_space<vmem>>, vector<1x1x8x16x4xf32>
    %25 = vector.shape_cast %24 : vector<1x1x8x16x4xf32> to vector<8x16x4xf32>
    %26 = vector.shape_cast %25 : vector<8x16x4xf32> to vector<128x4xf32>
    %27 = tpu.concatenate %2, %5, %8, %11, %14, %17, %20, %23, %26 in 1 : vector<128x4xf32>, vector<128x4xf32>, vector<128x4xf32>, vector<128x4xf32>, vector<128x4xf32>, vector<128x4xf32>, vector<128x4xf32>, vector<128x4xf32>, vector<128x4xf32> -> vector<128x36xf32>
    %c0_42 = arith.constant 0 : index
    %c0_43 = arith.constant 0 : index
    %c0_44 = arith.constant 0 : index
    %28 = vector.load %arg3[%c0_42, %c0_43, %c0_44] : memref<2x36x16xf32, #tpu.memory_space<vmem>>, vector<1x36x16xf32>
    %29 = vector.shape_cast %28 : vector<1x36x16xf32> to vector<36x16xf32>
    %cst = arith.constant dense<0.000000e+00> : vector<128x16xf32>
    %30 = tpu.matmul %27, %29, %cst {dimension_numbers = #tpu.dot_dimension_numbers<[1], [0], [0], [1], [0, 0, 1, 1], [], []>} : vector<128x36xf32>, vector<36x16xf32>, vector<128x16xf32> -> vector<128x16xf32>
    %c0_45 = arith.constant 0 : index
    %c0_46 = arith.constant 0 : index
    %c0_47 = arith.constant 0 : index
    %31 = vector.load %arg4[%c0_45, %c0_46, %c0_47] : memref<2x1x16xf32, #tpu.memory_space<vmem>>, vector<1x1x16xf32>
    %32 = vector.shape_cast %31 : vector<1x1x16xf32> to vector<1x16xf32>
    %33 = vector.broadcast %32 : vector<1x16xf32> to vector<128x16xf32>
    %34 = arith.addf %30, %33 : vector<128x16xf32>
    %35 = vector.shape_cast %34 : vector<128x16xf32> to vector<8x16x16xf32>
    %c0_48 = arith.constant 0 : index
    %c0_49 = arith.constant 0 : index
    %c0_50 = arith.constant 0 : index
    %c0_51 = arith.constant 0 : index
    %c0_52 = arith.constant 0 : index
    %36 = vector.load %arg5[%c0_48, %c0_49, %c0_50, %c0_51, %c0_52] : memref<1x8x2x16x16xf32, #tpu.memory_space<vmem>>, vector<1x8x1x16x16xf32>
    %37 = vector.shape_cast %36 : vector<1x8x1x16x16xf32> to vector<8x16x16xf32>
    %38 = vector.shape_cast %35 : vector<8x16x16xf32> to vector<1x8x1x16x16xf32>
    tpu.vector_store %arg5[%c0_48, %c0_49, %c0_50, %c0_51, %c0_52], %38 {strides = array<i32>} : memref<1x8x2x16x16xf32, #tpu.memory_space<vmem>>, vector<1x8x1x16x16xf32>,
    %c1_53 = arith.constant 1 : index
    %c0_54 = arith.constant 0 : index
    %c0_55 = arith.constant 0 : index
    %39 = vector.load %arg3[%c1_53, %c0_54, %c0_55] : memref<2x36x16xf32, #tpu.memory_space<vmem>>, vector<1x36x16xf32>
    %40 = vector.shape_cast %39 : vector<1x36x16xf32> to vector<36x16xf32>
    %cst_56 = arith.constant dense<0.000000e+00> : vector<128x16xf32>
    %41 = tpu.matmul %27, %40, %cst_56 {dimension_numbers = #tpu.dot_dimension_numbers<[1], [0], [0], [1], [0, 0, 1, 1], [], []>} : vector<128x36xf32>, vector<36x16xf32>, vector<128x16xf32> -> vector<128x16xf32>
    %c1_57 = arith.constant 1 : index
    %c0_58 = arith.constant 0 : index
    %c0_59 = arith.constant 0 : index
    %42 = vector.load %arg4[%c1_57, %c0_58, %c0_59] : memref<2x1x16xf32, #tpu.memory_space<vmem>>, vector<1x1x16xf32>
    %43 = vector.shape_cast %42 : vector<1x1x16xf32> to vector<1x16xf32>
    %44 = vector.broadcast %43 : vector<1x16xf32> to vector<128x16xf32>
    %45 = arith.addf %41, %44 : vector<128x16xf32>
    %46 = vector.shape_cast %45 : vector<128x16xf32> to vector<8x16x16xf32>
    %c0_60 = arith.constant 0 : index
    %c0_61 = arith.constant 0 : index
    %c1_62 = arith.constant 1 : index
    %c0_63 = arith.constant 0 : index
    %c0_64 = arith.constant 0 : index
    %47 = vector.load %arg5[%c0_60, %c0_61, %c1_62, %c0_63, %c0_64] : memref<1x8x2x16x16xf32, #tpu.memory_space<vmem>>, vector<1x8x1x16x16xf32>
    %48 = vector.shape_cast %47 : vector<1x8x1x16x16xf32> to vector<8x16x16xf32>
    %49 = vector.shape_cast %46 : vector<8x16x16xf32> to vector<1x8x1x16x16xf32>
    tpu.vector_store %arg5[%c0_60, %c0_61, %c1_62, %c0_63, %c0_64], %49 {strides = array<i32>} : memref<1x8x2x16x16xf32, #tpu.memory_space<vmem>>, vector<1x8x1x16x16xf32>,
    return
  }
  func.func @transform_0(%arg0: i32, %arg1: i32) -> (i32, i32, i32, i32, i32) {
    %c0_i32 = arith.constant 0 : i32
    %c0_i32_0 = arith.constant 0 : i32
    %c0_i32_1 = arith.constant 0 : i32
    %c0_i32_2 = arith.constant 0 : i32
    return %arg0, %arg1, %c0_i32, %c0_i32_0, %c0_i32_1 : i32, i32, i32, i32, i32
  }
  func.func @transform_1(%arg0: i32, %arg1: i32) -> (i32, i32, i32) {
    %c0_i32 = arith.constant 0 : i32
    %c0_i32_0 = arith.constant 0 : i32
    %c0_i32_1 = arith.constant 0 : i32
    %c0_i32_2 = arith.constant 0 : i32
    return %c0_i32, %c0_i32_0, %c0_i32_1 : i32, i32, i32
  }
  func.func @transform_2(%arg0: i32, %arg1: i32) -> (i32, i32, i32) {
    %c0_i32 = arith.constant 0 : i32
    %c0_i32_0 = arith.constant 0 : i32
    %c0_i32_1 = arith.constant 0 : i32
    %c0_i32_2 = arith.constant 0 : i32
    return %c0_i32, %c0_i32_0, %c0_i32_1 : i32, i32, i32
  }
  func.func @transform_3(%arg0: i32, %arg1: i32) -> (i32, i32, i32, i32, i32) {
    %c0_i32 = arith.constant 0 : i32
    %c0_i32_0 = arith.constant 0 : i32
    %c0_i32_1 = arith.constant 0 : i32
    %c0_i32_2 = arith.constant 0 : i32
    return %arg0, %arg1, %c0_i32, %c0_i32_0, %c0_i32_1 : i32, i32, i32, i32, i32
  }
}

</mosaic_0001>

<llo_original>
// kernel: unpooling_as_convolution.1
$region0: #{unpooling_as_convolution.1}
  #allocation0 [shape = 'u32[]', space=smem, size = 0x4, offset = 0x4, fixed_abs, tag = 'smem constant byte address 0x4 - core index']
  #allocation1 [shape = 'u32[72,128]{1,0:T(1,128)}', space=vmem, size = 0x9000, scoped, tag = 'internal scratch']
  %s0 = inlined_call_operand.vmem [shape: f32[2,2,10,18,4], index: 0, kind: input, shape index: {}]
  %s1 = inlined_call_operand.vmem [shape: f32[2,36,16], index: 1, kind: input, shape index: {}]
  %s2 = inlined_call_operand.vmem [shape: f32[2,1,16], index: 2, kind: input, shape index: {}]
  %s3 = inlined_call_operand.vmem [shape: f32[2,16,2,16,16], index: 3, kind: output, shape index: {}]
  %s4 = sld [smem:[#allocation0]]
  $region45: #{unpooling_as_convolution.1} parent=0
    _
  %s6 = ssub.s32 1, %s4
  %s7 = scalar_select 0, %s6, %s4
  loop: start=0, step=1, limit=6
  $region2: #{unpooling_as_convolution.1} parent=0 // loop_pre_header
    _
  $region3: #{unpooling_as_convolution.1} parent=0 // loop_header
    %s9 = sphi 0, %s13
    %p10 = scmp.ge.s32.totalorder %s9, 6
    %s16 = sphi 0, %s28
    %s17 = sphi 0, %s24
    %s18 = sphi 0, %s16
    %s19 = sphi 0, %s17
    %s20 = sphi 0, %s18
    %s21 = sphi 0, %s19
    %s33 = sphi 0, %s35
    %s36 = sphi 0, %s33
    %s37 = sphi 0, %s36
    %s53 = sphi 0, %s37
    %s57 = sphi 0, %s57
    %s59 = sphi 0, %s57
    %s60 = sphi 0, %s59
    %s74 = sphi 0, %s60
    %s78 = sphi 0, %s78
    %s80 = sphi 0, %s78
    %s81 = sphi 0, %s80
    %s95 = sphi 0, %s81
    %s103 = sphi 0, %s105
    %s106 = sphi 0, %s103
    %s107 = sphi 0, %s106
    %s123 = sphi 0, %s107
  $region4: #{unpooling_as_convolution.1} parent=0 // loop_header_branch
    %12 = sbr.rel (%p10) target = $region8
  $region5: #{unpooling_as_convolution.1} parent=0 // loop_body
    %s14 = ssub.s32 %s9, 1
    %s15 = ssub.s32 %s9, 2
    %s22 = sadd.s32 1, %s17
    %p23 = scmp.ge.s32.totalorder %s22, 2
    %s24 = scalar_select %p23, 0, %s22
    %s25 = sadd.s32 1, %s16
    %s26 = scalar_select %p23, %s25, %s16
    %p27 = scmp.ge.s32.totalorder %s26, 2
    %s28 = scalar_select %p27, 0, %s26
    %s29 = ssub.s32 %s16, %s28
    %s30 = ssub.s32 %s17, %s24
    %s31 = sor.u32 %s29, %s30
    %p32 = scmp.eq.s32.totalorder %s31, 0
    %s34 = sadd.s32 %s33, 1
    %s35 = scalar_select %p32, %s33, %s34
    %p38 = pneg %p32
    %p39 = scmp.eq.s32.totalorder %s9, 3
    %p40 = por %p38, %p39
    %p41 = scmp.ne.s32.totalorder %s33, %s36
    %p42 = scmp.eq.s32.totalorder %s9, 0
    %p43 = por %p41, %p42
    %p44 = scmp.ne.s32.totalorder %s33, %s36
    %p45 = scmp.eq.s32.totalorder %s14, 3
    %p46 = por %p44, %p45
    %p47 = scmp.ne.s32.totalorder %s36, %s37
    %p48 = scmp.eq.s32.totalorder %s14, 0
    %p49 = por %p47, %p48
    %p50 = scmp.ne.s32.totalorder %s36, %s37
    %p51 = scmp.eq.s32.totalorder %s15, 3
    %p52 = por %p50, %p51
    %p54 = scmp.ne.s32.totalorder %s37, %s53
    %p55 = scmp.eq.s32.totalorder %s15, 0
    %p56 = por %p54, %p55
    %s58 = sadd.s32 %s57, 1
    %p61 = scmp.eq.s32.totalorder %s9, 3
    %p62 = scmp.ne.s32.totalorder %s57, %s59
    %p63 = scmp.eq.s32.totalorder %s9, 0
    %p64 = por %p62, %p63
    %p65 = scmp.ne.s32.totalorder %s57, %s59
    %p66 = scmp.eq.s32.totalorder %s14, 3
    %p67 = por %p65, %p66
    %p68 = scmp.ne.s32.totalorder %s59, %s60
    %p69 = scmp.eq.s32.totalorder %s14, 0
    %p70 = por %p68, %p69
    %p71 = scmp.ne.s32.totalorder %s59, %s60
    %p72 = scmp.eq.s32.totalorder %s15, 3
    %p73 = por %p71, %p72
    %p75 = scmp.ne.s32.totalorder %s60, %s74
    %p76 = scmp.eq.s32.totalorder %s15, 0
    %p77 = por %p75, %p76
    %s79 = sadd.s32 %s78, 1
    %p82 = scmp.eq.s32.totalorder %s9, 3
    %p83 = scmp.ne.s32.totalorder %s78, %s80
    %p84 = scmp.eq.s32.totalorder %s9, 0
    %p85 = por %p83, %p84
    %p86 = scmp.ne.s32.totalorder %s78, %s80
    %p87 = scmp.eq.s32.totalorder %s14, 3
    %p88 = por %p86, %p87
    %p89 = scmp.ne.s32.totalorder %s80, %s81
    %p90 = scmp.eq.s32.totalorder %s14, 0
    %p91 = por %p89, %p90
    %p92 = scmp.ne.s32.totalorder %s80, %s81
    %p93 = scmp.eq.s32.totalorder %s15, 3
    %p94 = por %p92, %p93
    %p96 = scmp.ne.s32.totalorder %s81, %s95
    %p97 = scmp.eq.s32.totalorder %s15, 0
    %p98 = por %p96, %p97
    %s99 = ssub.s32 %s16, %s28
    %s100 = ssub.s32 %s17, %s24
    %s101 = sor.u32 %s99, %s100
    %p102 = scmp.eq.s32.totalorder %s101, 0
    %s104 = sadd.s32 %s103, 1
    %s105 = scalar_select %p102, %s103, %s104
    %p108 = pneg %p102
    %p109 = scmp.eq.s32.totalorder %s9, 3
    %p110 = por %p108, %p109
    %p111 = scmp.ne.s32.totalorder %s103, %s106
    %p112 = scmp.eq.s32.totalorder %s9, 0
    %p113 = por %p111, %p112
    %p114 = scmp.ne.s32.totalorder %s103, %s106
    %p115 = scmp.eq.s32.totalorder %s14, 3
    %p116 = por %p114, %p115
    %p117 = scmp.ne.s32.totalorder %s106, %s107
    %p118 = scmp.eq.s32.totalorder %s14, 0
    %p119 = por %p117, %p118
    %p120 = scmp.ne.s32.totalorder %s106, %s107
    %p121 = scmp.eq.s32.totalorder %s15, 3
    %p122 = por %p120, %p121
    %p124 = scmp.ne.s32.totalorder %s107, %s123
    %p125 = scmp.eq.s32.totalorder %s15, 0
    %p126 = por %p124, %p125
    %p127 = scmp.le.s32.totalorder 1, %s9
    %p128 = scmp.lt.s32.totalorder %s9, 5
    %p129 = pnand %p127, %p128
    %p130 = pneg %p129
    // Predicated region
    $region9: #{unpooling_as_convolution.1} parent=5 // pred_check
      _
    $region10: #{unpooling_as_convolution.1} parent=5 // pred_check_branch
      %132 = sbr.rel (%p129) target = $region12
    $region11: #{unpooling_as_convolution.1} parent=5 // pred_region
      %s133 = ssub.s32 %s9, 1
      // Predicated region
      $region13: #{unpooling_as_convolution.1} parent=11 // pred_check
        %p134 = pneg %p70
      $region14: #{unpooling_as_convolution.1} parent=11 // pred_check_branch
        %136 = sbr.rel (%p134) target = $region16
      $region15: #{unpooling_as_convolution.1} parent=11 // pred_region
        _
      $region16: #{unpooling_as_convolution.1} parent=11 // pred_fallthru
        _
      // Predicated region
      $region17: #{unpooling_as_convolution.1} parent=11 // pred_check
        %p137 = pneg %p91
      $region18: #{unpooling_as_convolution.1} parent=11 // pred_check_branch
        %139 = sbr.rel (%p137) target = $region20
      $region19: #{unpooling_as_convolution.1} parent=11 // pred_region
        _
      $region20: #{unpooling_as_convolution.1} parent=11 // pred_fallthru
        _
    $region12: #{unpooling_as_convolution.1} parent=5 // pred_fallthru
      _
    %p140 = scmp.lt.s32.totalorder %s9, 4
    // Predicated region
    $region21: #{unpooling_as_convolution.1} parent=5 // pred_check
      %p141 = pneg %p140
    $region22: #{unpooling_as_convolution.1} parent=5 // pred_check_branch
      %143 = sbr.rel (%p141) target = $region24
    $region23: #{unpooling_as_convolution.1} parent=5 // pred_region
      // Predicated region
      $region25: #{unpooling_as_convolution.1} parent=23 // pred_check
        %p144 = pneg %p43
      $region26: #{unpooling_as_convolution.1} parent=23 // pred_check_branch
        %146 = sbr.rel (%p144) target = $region28
      $region27: #{unpooling_as_convolution.1} parent=23 // pred_region
        %p147 = scmp.lt.s32.totalorder %s16, 1
        %s148 = scalar_select %p147, %s16, 1
        %p149 = scmp.lt.s32.totalorder %s17, 1
        %s150 = scalar_select %p149, %s17, 1
        %s151 = smul.addr %s150, 30
        %s152 = smul.addr %s148, 60
        %s153 = sadd.s32 %s151, %s152
        %s154 = smul.addr %s153, 8
        %s155 = scalar_lea.vmem %s0, %s154
      $region28: #{unpooling_as_convolution.1} parent=23 // pred_fallthru
        _
    $region24: #{unpooling_as_convolution.1} parent=5 // pred_fallthru
      _
    %p156 = scmp.le.s32.totalorder 1, %s9
    %p157 = scmp.lt.s32.totalorder %s9, 5
    %p158 = pnand %p156, %p157
    %p159 = pneg %p158
    // Predicated region
    $region29: #{unpooling_as_convolution.1} parent=5 // pred_check
      _
    $region30: #{unpooling_as_convolution.1} parent=5 // pred_check_branch
      %161 = sbr.rel (%p158) target = $region32
    $region31: #{unpooling_as_convolution.1} parent=5 // pred_region
      %s162 = ssub.s32 %s9, 1
      %p163 = scmp.lt.s32.totalorder %s18, 1
      %s164 = scalar_select %p163, %s18, 1
      %p165 = scmp.lt.s32.totalorder %s19, 1
      %s166 = scalar_select %p165, %s19, 1
      %s167 = smul.addr %s166, 30
      %s168 = smul.addr %s164, 60
      %s169 = sadd.s32 %s167, %s168
      %s170 = smul.addr %s169, 8
      %s171 = scalar_lea.vmem %s0, %s170
      %p172 = pneg %p49
      %p173 = pneg %p46
      %p174 = pneg %p70
      %p175 = pneg %p67
      %p176 = pneg %p91
      %p177 = pneg %p88
      %p178 = pneg %p119
      %p179 = pneg %p116
      %s180 = smul.u32 8, %s19
      %p181 = scmp.lt.s32.totalorder %s18, 1
      %s182 = scalar_select %p181, %s18, 1
      %p183 = scmp.lt.s32.totalorder %s180, 15
      %s184 = scalar_select %p183, %s180, 15
      %s185 = smul.addr %s184, 4
      %s186 = smul.addr %s182, 64
      %s187 = sadd.s32 %s185, %s186
      %s188 = smul.addr %s187, 8
      %s189 = scalar_lea.vmem %s3, %s188
      %p190 = scmp.lt.s32.totalorder %s18, 1
      %s191 = scalar_select %p190, %s18, 1
      %p192 = scmp.lt.s32.totalorder %s19, 1
      %s193 = scalar_select %p192, %s19, 1
      %s194 = smul.addr %s193, 30
      %s195 = smul.addr %s191, 60
      %s196 = sadd.s32 %s194, %s195
      %s197 = smul.addr %s196, 8
      %s198 = scalar_lea.vmem %s0, %s197
      %s199 = smul.u32 8, %s19
      %p200 = scmp.lt.s32.totalorder %s18, 1
      %s201 = scalar_select %p200, %s18, 1
      %p202 = scmp.lt.s32.totalorder %s199, 15
      %s203 = scalar_select %p202, %s199, 15
      %s204 = smul.addr %s203, 4
      %s205 = smul.addr %s201, 64
      %s206 = sadd.s32 %s204, %s205
      %s207 = smul.addr %s206, 8
      %s208 = scalar_lea.vmem %s3, %s207
      %s209 = smul.u32 8, %s19
      %v210 = vld [vmem:[%s198] sm:$0xff]
      %v211 = vld [vmem:[%s198 + $0x8] sm:$0xff]
      %v212 = vld [vmem:[%s198 + $0x18] sm:$0xff]
      %v213 = vld [vmem:[%s198 + $0x20] sm:$0xff]
      %v214 = vld [vmem:[%s198 + $0x30] sm:$0xff]
      %v215 = vld [vmem:[%s198 + $0x38] sm:$0xff]
      %v216 = vld [vmem:[%s198 + $0x48] sm:$0xff]
      %v217 = vld [vmem:[%s198 + $0x50] sm:$0xff]
      %v218 = vld [vmem:[%s198 + $0x60] sm:$0xff]
      %v219 = vld [vmem:[%s198 + $0x68] sm:$0xff]
      %v220 = vld [vmem:[%s198 + $0x78] sm:$0xff]
      %v221 = vld [vmem:[%s198 + $0x80] sm:$0xff]
      %v222 = vld [vmem:[%s198 + $0x90] sm:$0xff]
      %v223 = vld [vmem:[%s198 + $0x98] sm:$0xff]
      %v224 = vld [vmem:[%s198 + $0xa8] sm:$0xff]
      %v225 = vld [vmem:[%s198 + $0xb0] sm:$0xff]
      %v226 = vld [vmem:[%s198 + $0x1] sm:$0xff]
      %v227 = vld [vmem:[%s198 + $0x9] sm:$0xff]
      %v228 = vld [vmem:[%s198 + $0x19] sm:$0xff]
      %v229 = vld [vmem:[%s198 + $0x21] sm:$0xff]
      %v230 = vld [vmem:[%s198 + $0x31] sm:$0xff]
      %v231 = vld [vmem:[%s198 + $0x39] sm:$0xff]
      %v232 = vld [vmem:[%s198 + $0x49] sm:$0xff]
      %v233 = vld [vmem:[%s198 + $0x51] sm:$0xff]
      %v234 = vld [vmem:[%s198 + $0x61] sm:$0xff]
      %v235 = vld [vmem:[%s198 + $0x69] sm:$0xff]
      %v236 = vld [vmem:[%s198 + $0x79] sm:$0xff]
      %v237 = vld [vmem:[%s198 + $0x81] sm:$0xff]
      %v238 = vld [vmem:[%s198 + $0x91] sm:$0xff]
      %v239 = vld [vmem:[%s198 + $0x99] sm:$0xff]
      %v240 = vld [vmem:[%s198 + $0xa9] sm:$0xff]
      %v241 = vld [vmem:[%s198 + $0xb1] sm:$0xff]
      %v242 = vld [vmem:[%s198 + $0x2] sm:$0xff]
      %v243 = vld [vmem:[%s198 + $0xa] sm:$0xff]
      %v244 = vld [vmem:[%s198 + $0x1a] sm:$0xff]
      %v245 = vld [vmem:[%s198 + $0x22] sm:$0xff]
      %v246 = vld [vmem:[%s198 + $0x32] sm:$0xff]
      %v247 = vld [vmem:[%s198 + $0x3a] sm:$0xff]
      %v248 = vld [vmem:[%s198 + $0x4a] sm:$0xff]
      %v249 = vld [vmem:[%s198 + $0x52] sm:$0xff]
      %v250 = vld [vmem:[%s198 + $0x62] sm:$0xff]
      %v251 = vld [vmem:[%s198 + $0x6a] sm:$0xff]
      %v252 = vld [vmem:[%s198 + $0x7a] sm:$0xff]
      %v253 = vld [vmem:[%s198 + $0x82] sm:$0xff]
      %v254 = vld [vmem:[%s198 + $0x92] sm:$0xff]
      %v255 = vld [vmem:[%s198 + $0x9a] sm:$0xff]
      %v256 = vld [vmem:[%s198 + $0xaa] sm:$0xff]
      %v257 = vld [vmem:[%s198 + $0xb2] sm:$0xff]
      %s258 = scalar_lea.vmem %s198, 24
      %v259 = vld [vmem:[%s258] sm:$0xff]
      %v260 = vld [vmem:[%s258 + $0x8] sm:$0xff]
      %v261 = vld [vmem:[%s258 + $0x18] sm:$0xff]
      %v262 = vld [vmem:[%s258 + $0x20] sm:$0xff]
      %v263 = vld [vmem:[%s258 + $0x30] sm:$0xff]
      %v264 = vld [vmem:[%s258 + $0x38] sm:$0xff]
      %v265 = vld [vmem:[%s258 + $0x48] sm:$0xff]
      %v266 = vld [vmem:[%s258 + $0x50] sm:$0xff]
      %v267 = vld [vmem:[%s258 + $0x60] sm:$0xff]
      %v268 = vld [vmem:[%s258 + $0x68] sm:$0xff]
      %v269 = vld [vmem:[%s258 + $0x78] sm:$0xff]
      %v270 = vld [vmem:[%s258 + $0x80] sm:$0xff]
      %v271 = vld [vmem:[%s258 + $0x90] sm:$0xff]
      %v272 = vld [vmem:[%s258 + $0x98] sm:$0xff]
      %v273 = vld [vmem:[%s258 + $0xa8] sm:$0xff]
      %v274 = vld [vmem:[%s258 + $0xb0] sm:$0xff]
      %v275 = vld [vmem:[%s258 + $0x1] sm:$0xff]
      %v276 = vld [vmem:[%s258 + $0x9] sm:$0xff]
      %v277 = vld [vmem:[%s258 + $0x19] sm:$0xff]
      %v278 = vld [vmem:[%s258 + $0x21] sm:$0xff]
      %v279 = vld [vmem:[%s258 + $0x31] sm:$0xff]
      %v280 = vld [vmem:[%s258 + $0x39] sm:$0xff]
      %v281 = vld [vmem:[%s258 + $0x49] sm:$0xff]
      %v282 = vld [vmem:[%s258 + $0x51] sm:$0xff]
      %v283 = vld [vmem:[%s258 + $0x61] sm:$0xff]
      %v284 = vld [vmem:[%s258 + $0x69] sm:$0xff]
      %v285 = vld [vmem:[%s258 + $0x79] sm:$0xff]
      %v286 = vld [vmem:[%s258 + $0x81] sm:$0xff]
      %v287 = vld [vmem:[%s258 + $0x91] sm:$0xff]
      %v288 = vld [vmem:[%s258 + $0x99] sm:$0xff]
      %v289 = vld [vmem:[%s258 + $0xa9] sm:$0xff]
      %v290 = vld [vmem:[%s258 + $0xb1] sm:$0xff]
      %v291 = vld [vmem:[%s258 + $0x2] sm:$0xff]
      %v292 = vld [vmem:[%s258 + $0xa] sm:$0xff]
      %v293 = vld [vmem:[%s258 + $0x1a] sm:$0xff]
      %v294 = vld [vmem:[%s258 + $0x22] sm:$0xff]
      %v295 = vld [vmem:[%s258 + $0x32] sm:$0xff]
      %v296 = vld [vmem:[%s258 + $0x3a] sm:$0xff]
      %v297 = vld [vmem:[%s258 + $0x4a] sm:$0xff]
      %v298 = vld [vmem:[%s258 + $0x52] sm:$0xff]
      %v299 = vld [vmem:[%s258 + $0x62] sm:$0xff]
      %v300 = vld [vmem:[%s258 + $0x6a] sm:$0xff]
      %v301 = vld [vmem:[%s258 + $0x7a] sm:$0xff]
      %v302 = vld [vmem:[%s258 + $0x82] sm:$0xff]
      %v303 = vld [vmem:[%s258 + $0x92] sm:$0xff]
      %v304 = vld [vmem:[%s258 + $0x9a] sm:$0xff]
      %v305 = vld [vmem:[%s258 + $0xaa] sm:$0xff]
      %v306 = vld [vmem:[%s258 + $0xb2] sm:$0xff]
      %s307 = scalar_lea.vmem %s198, 48
      %v308 = vld [vmem:[%s307] sm:$0xff]
      %v309 = vld [vmem:[%s307 + $0x8] sm:$0xff]
      %v310 = vld [vmem:[%s307 + $0x18] sm:$0xff]
      %v311 = vld [vmem:[%s307 + $0x20] sm:$0xff]
      %v312 = vld [vmem:[%s307 + $0x30] sm:$0xff]
      %v313 = vld [vmem:[%s307 + $0x38] sm:$0xff]
      %v314 = vld [vmem:[%s307 + $0x48] sm:$0xff]
      %v315 = vld [vmem:[%s307 + $0x50] sm:$0xff]
      %v316 = vld [vmem:[%s307 + $0x60] sm:$0xff]
      %v317 = vld [vmem:[%s307 + $0x68] sm:$0xff]
      %v318 = vld [vmem:[%s307 + $0x78] sm:$0xff]
      %v319 = vld [vmem:[%s307 + $0x80] sm:$0xff]
      %v320 = vld [vmem:[%s307 + $0x90] sm:$0xff]
      %v321 = vld [vmem:[%s307 + $0x98] sm:$0xff]
      %v322 = vld [vmem:[%s307 + $0xa8] sm:$0xff]
      %v323 = vld [vmem:[%s307 + $0xb0] sm:$0xff]
      %v324 = vld [vmem:[%s307 + $0x1] sm:$0xff]
      %v325 = vld [vmem:[%s307 + $0x9] sm:$0xff]
      %v326 = vld [vmem:[%s307 + $0x19] sm:$0xff]
      %v327 = vld [vmem:[%s307 + $0x21] sm:$0xff]
      %v328 = vld [vmem:[%s307 + $0x31] sm:$0xff]
      %v329 = vld [vmem:[%s307 + $0x39] sm:$0xff]
      %v330 = vld [vmem:[%s307 + $0x49] sm:$0xff]
      %v331 = vld [vmem:[%s307 + $0x51] sm:$0xff]
      %v332 = vld [vmem:[%s307 + $0x61] sm:$0xff]
      %v333 = vld [vmem:[%s307 + $0x69] sm:$0xff]
      %v334 = vld [vmem:[%s307 + $0x79] sm:$0xff]
      %v335 = vld [vmem:[%s307 + $0x81] sm:$0xff]
      %v336 = vld [vmem:[%s307 + $0x91] sm:$0xff]
      %v337 = vld [vmem:[%s307 + $0x99] sm:$0xff]
      %v338 = vld [vmem:[%s307 + $0xa9] sm:$0xff]
      %v339 = vld [vmem:[%s307 + $0xb1] sm:$0xff]
      %v340 = vld [vmem:[%s307 + $0x2] sm:$0xff]
      %v341 = vld [vmem:[%s307 + $0xa] sm:$0xff]
      %v342 = vld [vmem:[%s307 + $0x1a] sm:$0xff]
      %v343 = vld [vmem:[%s307 + $0x22] sm:$0xff]
      %v344 = vld [vmem:[%s307 + $0x32] sm:$0xff]
      %v345 = vld [vmem:[%s307 + $0x3a] sm:$0xff]
      %v346 = vld [vmem:[%s307 + $0x4a] sm:$0xff]
      %v347 = vld [vmem:[%s307 + $0x52] sm:$0xff]
      %v348 = vld [vmem:[%s307 + $0x62] sm:$0xff]
      %v349 = vld [vmem:[%s307 + $0x6a] sm:$0xff]
      %v350 = vld [vmem:[%s307 + $0x7a] sm:$0xff]
      %v351 = vld [vmem:[%s307 + $0x82] sm:$0xff]
      %v352 = vld [vmem:[%s307 + $0x92] sm:$0xff]
      %v353 = vld [vmem:[%s307 + $0x9a] sm:$0xff]
      %v354 = vld [vmem:[%s307 + $0xaa] sm:$0xff]
      %v355 = vld [vmem:[%s307 + $0xb2] sm:$0xff]
      %372 = vrot.lane.b32.xlu0 %v226, 4
      %v373 = vpop.permute.xlu0 %372
      %374 = vrot.lane.b32.xlu0 %v227, 4
      %v375 = vpop.permute.xlu0 %374
      %376 = vrot.lane.b32.xlu0 %v228, 4
      %v377 = vpop.permute.xlu0 %376
      %378 = vrot.lane.b32.xlu0 %v229, 4
      %v379 = vpop.permute.xlu0 %378
      %380 = vrot.lane.b32.xlu0 %v230, 4
      %v381 = vpop.permute.xlu0 %380
      %382 = vrot.lane.b32.xlu0 %v231, 4
      %v383 = vpop.permute.xlu0 %382
      %384 = vrot.lane.b32.xlu0 %v232, 4
      %v385 = vpop.permute.xlu0 %384
      %386 = vrot.lane.b32.xlu0 %v233, 4
      %v387 = vpop.permute.xlu0 %386
      %388 = vrot.lane.b32.xlu0 %v234, 4
      %v389 = vpop.permute.xlu0 %388
      %390 = vrot.lane.b32.xlu0 %v235, 4
      %v391 = vpop.permute.xlu0 %390
      %392 = vrot.lane.b32.xlu0 %v236, 4
      %v393 = vpop.permute.xlu0 %392
      %394 = vrot.lane.b32.xlu0 %v237, 4
      %v395 = vpop.permute.xlu0 %394
      %396 = vrot.lane.b32.xlu0 %v238, 4
      %v397 = vpop.permute.xlu0 %396
      %398 = vrot.lane.b32.xlu0 %v239, 4
      %v399 = vpop.permute.xlu0 %398
      %400 = vrot.lane.b32.xlu0 %v240, 4
      %v401 = vpop.permute.xlu0 %400
      %402 = vrot.lane.b32.xlu0 %v241, 4
      %v403 = vpop.permute.xlu0 %402
      %436 = vrot.lane.b32.xlu0 %v242, 8
      %v437 = vpop.permute.xlu0 %436
      %438 = vrot.lane.b32.xlu0 %v243, 8
      %v439 = vpop.permute.xlu0 %438
      %440 = vrot.lane.b32.xlu0 %v244, 8
      %v441 = vpop.permute.xlu0 %440
      %442 = vrot.lane.b32.xlu0 %v245, 8
      %v443 = vpop.permute.xlu0 %442
      %444 = vrot.lane.b32.xlu0 %v246, 8
      %v445 = vpop.permute.xlu0 %444
      %446 = vrot.lane.b32.xlu0 %v247, 8
      %v447 = vpop.permute.xlu0 %446
      %448 = vrot.lane.b32.xlu0 %v248, 8
      %v449 = vpop.permute.xlu0 %448
      %450 = vrot.lane.b32.xlu0 %v249, 8
      %v451 = vpop.permute.xlu0 %450
      %452 = vrot.lane.b32.xlu0 %v250, 8
      %v453 = vpop.permute.xlu0 %452
      %454 = vrot.lane.b32.xlu0 %v251, 8
      %v455 = vpop.permute.xlu0 %454
      %456 = vrot.lane.b32.xlu0 %v252, 8
      %v457 = vpop.permute.xlu0 %456
      %458 = vrot.lane.b32.xlu0 %v253, 8
      %v459 = vpop.permute.xlu0 %458
      %460 = vrot.lane.b32.xlu0 %v254, 8
      %v461 = vpop.permute.xlu0 %460
      %462 = vrot.lane.b32.xlu0 %v255, 8
      %v463 = vpop.permute.xlu0 %462
      %464 = vrot.lane.b32.xlu0 %v256, 8
      %v465 = vpop.permute.xlu0 %464
      %466 = vrot.lane.b32.xlu0 %v257, 8
      %v467 = vpop.permute.xlu0 %466
      %500 = vrot.lane.b32.xlu0 %v259, 12
      %v501 = vpop.permute.xlu0 %500
      %502 = vrot.lane.b32.xlu0 %v260, 12
      %v503 = vpop.permute.xlu0 %502
      %504 = vrot.lane.b32.xlu0 %v261, 12
      %v505 = vpop.permute.xlu0 %504
      %506 = vrot.lane.b32.xlu0 %v262, 12
      %v507 = vpop.permute.xlu0 %506
      %508 = vrot.lane.b32.xlu0 %v263, 12
      %v509 = vpop.permute.xlu0 %508
      %510 = vrot.lane.b32.xlu0 %v264, 12
      %v511 = vpop.permute.xlu0 %510
      %512 = vrot.lane.b32.xlu0 %v265, 12
      %v513 = vpop.permute.xlu0 %512
      %514 = vrot.lane.b32.xlu0 %v266, 12
      %v515 = vpop.permute.xlu0 %514
      %516 = vrot.lane.b32.xlu0 %v267, 12
      %v517 = vpop.permute.xlu0 %516
      %518 = vrot.lane.b32.xlu0 %v268, 12
      %v519 = vpop.permute.xlu0 %518
      %520 = vrot.lane.b32.xlu0 %v269, 12
      %v521 = vpop.permute.xlu0 %520
      %522 = vrot.lane.b32.xlu0 %v270, 12
      %v523 = vpop.permute.xlu0 %522
      %524 = vrot.lane.b32.xlu0 %v271, 12
      %v525 = vpop.permute.xlu0 %524
      %526 = vrot.lane.b32.xlu0 %v272, 12
      %v527 = vpop.permute.xlu0 %526
      %528 = vrot.lane.b32.xlu0 %v273, 12
      %v529 = vpop.permute.xlu0 %528
      %530 = vrot.lane.b32.xlu0 %v274, 12
      %v531 = vpop.permute.xlu0 %530
      %564 = vrot.lane.b32.xlu0 %v275, 16
      %v565 = vpop.permute.xlu0 %564
      %566 = vrot.lane.b32.xlu0 %v276, 16
      %v567 = vpop.permute.xlu0 %566
      %568 = vrot.lane.b32.xlu0 %v277, 16
      %v569 = vpop.permute.xlu0 %568
      %570 = vrot.lane.b32.xlu0 %v278, 16
      %v571 = vpop.permute.xlu0 %570
      %572 = vrot.lane.b32.xlu0 %v279, 16
      %v573 = vpop.permute.xlu0 %572
      %574 = vrot.lane.b32.xlu0 %v280, 16
      %v575 = vpop.permute.xlu0 %574
      %576 = vrot.lane.b32.xlu0 %v281, 16
      %v577 = vpop.permute.xlu0 %576
      %578 = vrot.lane.b32.xlu0 %v282, 16
      %v579 = vpop.permute.xlu0 %578
      %580 = vrot.lane.b32.xlu0 %v283, 16
      %v581 = vpop.permute.xlu0 %580
      %582 = vrot.lane.b32.xlu0 %v284, 16
      %v583 = vpop.permute.xlu0 %582
      %584 = vrot.lane.b32.xlu0 %v285, 16
      %v585 = vpop.permute.xlu0 %584
      %586 = vrot.lane.b32.xlu0 %v286, 16
      %v587 = vpop.permute.xlu0 %586
      %588 = vrot.lane.b32.xlu0 %v287, 16
      %v589 = vpop.permute.xlu0 %588
      %590 = vrot.lane.b32.xlu0 %v288, 16
      %v591 = vpop.permute.xlu0 %590
      %592 = vrot.lane.b32.xlu0 %v289, 16
      %v593 = vpop.permute.xlu0 %592
      %594 = vrot.lane.b32.xlu0 %v290, 16
      %v595 = vpop.permute.xlu0 %594
      %628 = vrot.lane.b32.xlu0 %v291, 20
      %v629 = vpop.permute.xlu0 %628
      %630 = vrot.lane.b32.xlu0 %v292, 20
      %v631 = vpop.permute.xlu0 %630
      %632 = vrot.lane.b32.xlu0 %v293, 20
      %v633 = vpop.permute.xlu0 %632
      %634 = vrot.lane.b32.xlu0 %v294, 20
      %v635 = vpop.permute.xlu0 %634
      %636 = vrot.lane.b32.xlu0 %v295, 20
      %v637 = vpop.permute.xlu0 %636
      %638 = vrot.lane.b32.xlu0 %v296, 20
      %v639 = vpop.permute.xlu0 %638
      %640 = vrot.lane.b32.xlu0 %v297, 20
      %v641 = vpop.permute.xlu0 %640
      %642 = vrot.lane.b32.xlu0 %v298, 20
      %v643 = vpop.permute.xlu0 %642
      %644 = vrot.lane.b32.xlu0 %v299, 20
      %v645 = vpop.permute.xlu0 %644
      %646 = vrot.lane.b32.xlu0 %v300, 20
      %v647 = vpop.permute.xlu0 %646
      %648 = vrot.lane.b32.xlu0 %v301, 20
      %v649 = vpop.permute.xlu0 %648
      %650 = vrot.lane.b32.xlu0 %v302, 20
      %v651 = vpop.permute.xlu0 %650
      %652 = vrot.lane.b32.xlu0 %v303, 20
      %v653 = vpop.permute.xlu0 %652
      %654 = vrot.lane.b32.xlu0 %v304, 20
      %v655 = vpop.permute.xlu0 %654
      %656 = vrot.lane.b32.xlu0 %v305, 20
      %v657 = vpop.permute.xlu0 %656
      %658 = vrot.lane.b32.xlu0 %v306, 20
      %v659 = vpop.permute.xlu0 %658
      %692 = vrot.lane.b32.xlu0 %v308, 24
      %v693 = vpop.permute.xlu0 %692
      %694 = vrot.lane.b32.xlu0 %v309, 24
      %v695 = vpop.permute.xlu0 %694
      %696 = vrot.lane.b32.xlu0 %v310, 24
      %v697 = vpop.permute.xlu0 %696
      %698 = vrot.lane.b32.xlu0 %v311, 24
      %v699 = vpop.permute.xlu0 %698
      %700 = vrot.lane.b32.xlu0 %v312, 24
      %v701 = vpop.permute.xlu0 %700
      %702 = vrot.lane.b32.xlu0 %v313, 24
      %v703 = vpop.permute.xlu0 %702
      %704 = vrot.lane.b32.xlu0 %v314, 24
      %v705 = vpop.permute.xlu0 %704
      %706 = vrot.lane.b32.xlu0 %v315, 24
      %v707 = vpop.permute.xlu0 %706
      %708 = vrot.lane.b32.xlu0 %v316, 24
      %v709 = vpop.permute.xlu0 %708
      %710 = vrot.lane.b32.xlu0 %v317, 24
      %v711 = vpop.permute.xlu0 %710
      %712 = vrot.lane.b32.xlu0 %v318, 24
      %v713 = vpop.permute.xlu0 %712
      %714 = vrot.lane.b32.xlu0 %v319, 24
      %v715 = vpop.permute.xlu0 %714
      %716 = vrot.lane.b32.xlu0 %v320, 24
      %v717 = vpop.permute.xlu0 %716
      %718 = vrot.lane.b32.xlu0 %v321, 24
      %v719 = vpop.permute.xlu0 %718
      %720 = vrot.lane.b32.xlu0 %v322, 24
      %v721 = vpop.permute.xlu0 %720
      %722 = vrot.lane.b32.xlu0 %v323, 24
      %v723 = vpop.permute.xlu0 %722
      %756 = vrot.lane.b32.xlu0 %v324, 28
      %v757 = vpop.permute.xlu0 %756
      %758 = vrot.lane.b32.xlu0 %v325, 28
      %v759 = vpop.permute.xlu0 %758
      %760 = vrot.lane.b32.xlu0 %v326, 28
      %v761 = vpop.permute.xlu0 %760
      %762 = vrot.lane.b32.xlu0 %v327, 28
      %v763 = vpop.permute.xlu0 %762
      %764 = vrot.lane.b32.xlu0 %v328, 28
      %v765 = vpop.permute.xlu0 %764
      %766 = vrot.lane.b32.xlu0 %v329, 28
      %v767 = vpop.permute.xlu0 %766
      %768 = vrot.lane.b32.xlu0 %v330, 28
      %v769 = vpop.permute.xlu0 %768
      %770 = vrot.lane.b32.xlu0 %v331, 28
      %v771 = vpop.permute.xlu0 %770
      %772 = vrot.lane.b32.xlu0 %v332, 28
      %v773 = vpop.permute.xlu0 %772
      %774 = vrot.lane.b32.xlu0 %v333, 28
      %v775 = vpop.permute.xlu0 %774
      %776 = vrot.lane.b32.xlu0 %v334, 28
      %v777 = vpop.permute.xlu0 %776
      %778 = vrot.lane.b32.xlu0 %v335, 28
      %v779 = vpop.permute.xlu0 %778
      %780 = vrot.lane.b32.xlu0 %v336, 28
      %v781 = vpop.permute.xlu0 %780
      %782 = vrot.lane.b32.xlu0 %v337, 28
      %v783 = vpop.permute.xlu0 %782
      %784 = vrot.lane.b32.xlu0 %v338, 28
      %v785 = vpop.permute.xlu0 %784
      %786 = vrot.lane.b32.xlu0 %v339, 28
      %v787 = vpop.permute.xlu0 %786
      %820 = vrot.lane.b32.xlu0 %v340, 32
      %v821 = vpop.permute.xlu0 %820
      %822 = vrot.lane.b32.xlu0 %v341, 32
      %v823 = vpop.permute.xlu0 %822
      %824 = vrot.lane.b32.xlu0 %v342, 32
      %v825 = vpop.permute.xlu0 %824
      %826 = vrot.lane.b32.xlu0 %v343, 32
      %v827 = vpop.permute.xlu0 %826
      %828 = vrot.lane.b32.xlu0 %v344, 32
      %v829 = vpop.permute.xlu0 %828
      %830 = vrot.lane.b32.xlu0 %v345, 32
      %v831 = vpop.permute.xlu0 %830
      %832 = vrot.lane.b32.xlu0 %v346, 32
      %v833 = vpop.permute.xlu0 %832
      %834 = vrot.lane.b32.xlu0 %v347, 32
      %v835 = vpop.permute.xlu0 %834
      %836 = vrot.lane.b32.xlu0 %v348, 32
      %v837 = vpop.permute.xlu0 %836
      %838 = vrot.lane.b32.xlu0 %v349, 32
      %v839 = vpop.permute.xlu0 %838
      %840 = vrot.lane.b32.xlu0 %v350, 32
      %v841 = vpop.permute.xlu0 %840
      %842 = vrot.lane.b32.xlu0 %v351, 32
      %v843 = vpop.permute.xlu0 %842
      %844 = vrot.lane.b32.xlu0 %v352, 32
      %v845 = vpop.permute.xlu0 %844
      %846 = vrot.lane.b32.xlu0 %v353, 32
      %v847 = vpop.permute.xlu0 %846
      %848 = vrot.lane.b32.xlu0 %v354, 32
      %v849 = vpop.permute.xlu0 %848
      %850 = vrot.lane.b32.xlu0 %v355, 32
      %v851 = vpop.permute.xlu0 %850
      %vm868 = vcmask 31744
      %v869 = vsel %vm868, %v210, %v373
      %v870 = vsel %vm868, %v211, %v375
      %v871 = vsel %vm868, %v212, %v377
      %v872 = vsel %vm868, %v213, %v379
      %v873 = vsel %vm868, %v214, %v381
      %v874 = vsel %vm868, %v215, %v383
      %v875 = vsel %vm868, %v216, %v385
      %v876 = vsel %vm868, %v217, %v387
      %v877 = vsel %vm868, %v218, %v389
      %v878 = vsel %vm868, %v219, %v391
      %v879 = vsel %vm868, %v220, %v393
      %v880 = vsel %vm868, %v221, %v395
      %v881 = vsel %vm868, %v222, %v397
      %v882 = vsel %vm868, %v223, %v399
      %v883 = vsel %vm868, %v224, %v401
      %v884 = vsel %vm868, %v225, %v403
      %vm885 = vcmask 64512
      %v886 = vsel %vm885, %v869, %v437
      %v887 = vsel %vm885, %v870, %v439
      %v888 = vsel %vm885, %v871, %v441
      %v889 = vsel %vm885, %v872, %v443
      %v890 = vsel %vm885, %v873, %v445
      %v891 = vsel %vm885, %v874, %v447
      %v892 = vsel %vm885, %v875, %v449
      %v893 = vsel %vm885, %v876, %v451
      %v894 = vsel %vm885, %v877, %v453
      %v895 = vsel %vm885, %v878, %v455
      %v896 = vsel %vm885, %v879, %v457
      %v897 = vsel %vm885, %v880, %v459
      %v898 = vsel %vm885, %v881, %v461
      %v899 = vsel %vm885, %v882, %v463
      %v900 = vsel %vm885, %v883, %v465
      %v901 = vsel %vm885, %v884, %v467
      %vm902 = vcmask 97280
      %v903 = vsel %vm902, %v886, %v501
      %v904 = vsel %vm902, %v887, %v503
      %v905 = vsel %vm902, %v888, %v505
      %v906 = vsel %vm902, %v889, %v507
      %v907 = vsel %vm902, %v890, %v509
      %v908 = vsel %vm902, %v891, %v511
      %v909 = vsel %vm902, %v892, %v513
      %v910 = vsel %vm902, %v893, %v515
      %v911 = vsel %vm902, %v894, %v517
      %v912 = vsel %vm902, %v895, %v519
      %v913 = vsel %vm902, %v896, %v521
      %v914 = vsel %vm902, %v897, %v523
      %v915 = vsel %vm902, %v898, %v525
      %v916 = vsel %vm902, %v899, %v527
      %v917 = vsel %vm902, %v900, %v529
      %v918 = vsel %vm902, %v901, %v531
      %vm919 = vcmask 130048
      %v920 = vsel %vm919, %v903, %v565
      %v921 = vsel %vm919, %v904, %v567
      %v922 = vsel %vm919, %v905, %v569
      %v923 = vsel %vm919, %v906, %v571
      %v924 = vsel %vm919, %v907, %v573
      %v925 = vsel %vm919, %v908, %v575
      %v926 = vsel %vm919, %v909, %v577
      %v927 = vsel %vm919, %v910, %v579
      %v928 = vsel %vm919, %v911, %v581
      %v929 = vsel %vm919, %v912, %v583
      %v930 = vsel %vm919, %v913, %v585
      %v931 = vsel %vm919, %v914, %v587
      %v932 = vsel %vm919, %v915, %v589
      %v933 = vsel %vm919, %v916, %v591
      %v934 = vsel %vm919, %v917, %v593
      %v935 = vsel %vm919, %v918, %v595
      %vm936 = vcmask 162816
      %v937 = vsel %vm936, %v920, %v629
      %v938 = vsel %vm936, %v921, %v631
      %v939 = vsel %vm936, %v922, %v633
      %v940 = vsel %vm936, %v923, %v635
      %v941 = vsel %vm936, %v924, %v637
      %v942 = vsel %vm936, %v925, %v639
      %v943 = vsel %vm936, %v926, %v641
      %v944 = vsel %vm936, %v927, %v643
      %v945 = vsel %vm936, %v928, %v645
      %v946 = vsel %vm936, %v929, %v647
      %v947 = vsel %vm936, %v930, %v649
      %v948 = vsel %vm936, %v931, %v651
      %v949 = vsel %vm936, %v932, %v653
      %v950 = vsel %vm936, %v933, %v655
      %v951 = vsel %vm936, %v934, %v657
      %v952 = vsel %vm936, %v935, %v659
      %vm953 = vcmask 195584
      %v954 = vsel %vm953, %v937, %v693
      %v955 = vsel %vm953, %v938, %v695
      %v956 = vsel %vm953, %v939, %v697
      %v957 = vsel %vm953, %v940, %v699
      %v958 = vsel %vm953, %v941, %v701
      %v959 = vsel %vm953, %v942, %v703
      %v960 = vsel %vm953, %v943, %v705
      %v961 = vsel %vm953, %v944, %v707
      %v962 = vsel %vm953, %v945, %v709
      %v963 = vsel %vm953, %v946, %v711
      %v964 = vsel %vm953, %v947, %v713
      %v965 = vsel %vm953, %v948, %v715
      %v966 = vsel %vm953, %v949, %v717
      %v967 = vsel %vm953, %v950, %v719
      %v968 = vsel %vm953, %v951, %v721
      %v969 = vsel %vm953, %v952, %v723
      %vm970 = vcmask 228352
      %v971 = vsel %vm970, %v954, %v757
      %v972 = vsel %vm970, %v955, %v759
      %v973 = vsel %vm970, %v956, %v761
      %v974 = vsel %vm970, %v957, %v763
      %v975 = vsel %vm970, %v958, %v765
      %v976 = vsel %vm970, %v959, %v767
      %v977 = vsel %vm970, %v960, %v769
      %v978 = vsel %vm970, %v961, %v771
      %v979 = vsel %vm970, %v962, %v773
      %v980 = vsel %vm970, %v963, %v775
      %v981 = vsel %vm970, %v964, %v777
      %v982 = vsel %vm970, %v965, %v779
      %v983 = vsel %vm970, %v966, %v781
      %v984 = vsel %vm970, %v967, %v783
      %v985 = vsel %vm970, %v968, %v785
      %v986 = vsel %vm970, %v969, %v787
      %vm987 = vcmask 261120
      %v988 = vsel %vm987, %v971, %v821
      %v989 = vsel %vm987, %v972, %v823
      %v990 = vsel %vm987, %v973, %v825
      %v991 = vsel %vm987, %v974, %v827
      %v992 = vsel %vm987, %v975, %v829
      %v993 = vsel %vm987, %v976, %v831
      %v994 = vsel %vm987, %v977, %v833
      %v995 = vsel %vm987, %v978, %v835
      %v996 = vsel %vm987, %v979, %v837
      %v997 = vsel %vm987, %v980, %v839
      %v998 = vsel %vm987, %v981, %v841
      %v999 = vsel %vm987, %v982, %v843
      %v1000 = vsel %vm987, %v983, %v845
      %v1001 = vsel %vm987, %v984, %v847
      %v1002 = vsel %vm987, %v985, %v849
      %v1003 = vsel %vm987, %v986, %v851
      %v1004 = vld [vmem:[%s1] sm:$0xff]
      %v1005 = vld [vmem:[%s1 + $0x8] sm:$0xff]
      %v1006 = vld [vmem:[%s1 + $0x10] sm:$0xff]
      %v1007 = vld [vmem:[%s1 + $0x18] sm:$0xff]
      %v1008 = vld [vmem:[%s1 + $0x20] sm:$0xf]
      %v1009 = vld [vmem:[%s2] sm:$0x1]
      %v1011 = vperm.slane %v1009, 0
      %vm1013 = vcmask 293888
      %v1015 = vsel %vm1013, %v988, 0
      %v1018 = vsel %vm1013, %v989, 0
      %v1021 = vsel %vm1013, %v990, 0
      %v1024 = vsel %vm1013, %v991, 0
      %v1027 = vsel %vm1013, %v992, 0
      %v1030 = vsel %vm1013, %v993, 0
      %v1033 = vsel %vm1013, %v994, 0
      %v1036 = vsel %vm1013, %v995, 0
      %v1039 = vsel %vm1013, %v996, 0
      %v1042 = vsel %vm1013, %v997, 0
      %v1045 = vsel %vm1013, %v998, 0
      %v1048 = vsel %vm1013, %v999, 0
      %v1051 = vsel %vm1013, %v1000, 0
      %v1054 = vsel %vm1013, %v1001, 0
      %v1057 = vsel %vm1013, %v1002, 0
      %v1060 = vsel %vm1013, %v1003, 0
      %vm1062 = vcmask 1043456
      %v1064 = vsel %vm1062, %v1008, 0
      %1066 = vmatpush.msra.mxu0 0.0
      %1067 = vmatpush.msra.mxu0 0.0
      %1068 = vmatpush.msra.mxu0 0.0
      %1069 = vmatpush.msra.mxu0 0.0
      %1070 = vmatpush.msra.mxu0 0.0
      %1071 = vmatpush.msra.mxu0 0.0
      %1072 = vmatpush.msra.mxu0 0.0
      %1073 = vmatpush.msra.mxu0 0.0
      %1074 = vmatpush.msra.mxu0 0.0
      %1075 = vmatpush.msra.mxu0 0.0
      %1076 = vmatpush.msra.mxu0 0.0
      %1077 = vmatpush.msra.mxu0 %v1064
      %1078 = vmatpush.msra.mxu0 %v1007
      %1079 = vmatpush.msra.mxu0 %v1006
      %1080 = vmatpush.msra.mxu0 %v1005
      %1081 = vmatpush.msra.mxu0 %v1004
      %1082 = vmatmul.f32.gmra.mxu0 %v1015
      %v1083 = vpop.f32.mrf.mxu0
      %v1084 = vadd.f32 %v1011, %v1083
      %1085 = vmatmul.f32.gmra.mxu0 %v1018
      %v1086 = vpop.f32.mrf.mxu0
      %v1087 = vadd.f32 %v1011, %v1086
      %1088 = vmatmul.f32.gmra.mxu0 %v1021
      %v1089 = vpop.f32.mrf.mxu0
      %v1090 = vadd.f32 %v1011, %v1089
      %1091 = vmatmul.f32.gmra.mxu0 %v1024
      %v1092 = vpop.f32.mrf.mxu0
      %v1093 = vadd.f32 %v1011, %v1092
      %1094 = vmatmul.f32.gmra.mxu0 %v1027
      %v1095 = vpop.f32.mrf.mxu0
      %v1096 = vadd.f32 %v1011, %v1095
      %1097 = vmatmul.f32.gmra.mxu0 %v1030
      %v1098 = vpop.f32.mrf.mxu0
      %v1099 = vadd.f32 %v1011, %v1098
      %1100 = vmatmul.f32.gmra.mxu0 %v1033
      %v1101 = vpop.f32.mrf.mxu0
      %v1102 = vadd.f32 %v1011, %v1101
      %1103 = vmatmul.f32.gmra.mxu0 %v1036
      %v1104 = vpop.f32.mrf.mxu0
      %v1105 = vadd.f32 %v1011, %v1104
      %1106 = vmatmul.f32.gmra.mxu0 %v1039
      %v1107 = vpop.f32.mrf.mxu0
      %v1108 = vadd.f32 %v1011, %v1107
      %1109 = vmatmul.f32.gmra.mxu0 %v1042
      %v1110 = vpop.f32.mrf.mxu0
      %v1111 = vadd.f32 %v1011, %v1110
      %1112 = vmatmul.f32.gmra.mxu0 %v1045
      %v1113 = vpop.f32.mrf.mxu0
      %v1114 = vadd.f32 %v1011, %v1113
      %1115 = vmatmul.f32.gmra.mxu0 %v1048
      %v1116 = vpop.f32.mrf.mxu0
      %v1117 = vadd.f32 %v1011, %v1116
      %1118 = vmatmul.f32.gmra.mxu0 %v1051
      %v1119 = vpop.f32.mrf.mxu0
      %v1120 = vadd.f32 %v1011, %v1119
      %1121 = vmatmul.f32.gmra.mxu0 %v1054
      %v1122 = vpop.f32.mrf.mxu0
      %v1123 = vadd.f32 %v1011, %v1122
      %1124 = vmatmul.f32.gmra.mxu0 %v1057
      %v1125 = vpop.f32.mrf.mxu0
      %v1126 = vadd.f32 %v1011, %v1125
      %1127 = vmatmul.f32.gmra.mxu0 %v1060
      %v1128 = vpop.f32.mrf.mxu0
      %v1129 = vadd.f32 %v1011, %v1128
      %1130 = vdwg.mxu0
      %1131 = vst.msk [vmem:[%s208] sm:$0xff] %vm919, %v1084
      %1132 = vst.msk [vmem:[%s208 + $0x8] sm:$0xff] %vm919, %v1087
      %1133 = vst.msk [vmem:[%s208 + $0x20] sm:$0xff] %vm919, %v1090
      %1134 = vst.msk [vmem:[%s208 + $0x28] sm:$0xff] %vm919, %v1093
      %1135 = vst.msk [vmem:[%s208 + $0x40] sm:$0xff] %vm919, %v1096
      %1136 = vst.msk [vmem:[%s208 + $0x48] sm:$0xff] %vm919, %v1099
      %1137 = vst.msk [vmem:[%s208 + $0x60] sm:$0xff] %vm919, %v1102
      %1138 = vst.msk [vmem:[%s208 + $0x68] sm:$0xff] %vm919, %v1105
      %1139 = vst.msk [vmem:[%s208 + $0x80] sm:$0xff] %vm919, %v1108
      %1140 = vst.msk [vmem:[%s208 + $0x88] sm:$0xff] %vm919, %v1111
      %1141 = vst.msk [vmem:[%s208 + $0xa0] sm:$0xff] %vm919, %v1114
      %1142 = vst.msk [vmem:[%s208 + $0xa8] sm:$0xff] %vm919, %v1117
      %1143 = vst.msk [vmem:[%s208 + $0xc0] sm:$0xff] %vm919, %v1120
      %1144 = vst.msk [vmem:[%s208 + $0xc8] sm:$0xff] %vm919, %v1123
      %1145 = vst.msk [vmem:[%s208 + $0xe0] sm:$0xff] %vm919, %v1126
      %1146 = vst.msk [vmem:[%s208 + $0xe8] sm:$0xff] %vm919, %v1129
      %s1147 = scalar_lea.vmem %s1, 40
      %v1148 = vld [vmem:[%s1147] sm:$0xff]
      %v1149 = vld [vmem:[%s1147 + $0x8] sm:$0xff]
      %v1150 = vld [vmem:[%s1147 + $0x10] sm:$0xff]
      %v1151 = vld [vmem:[%s1147 + $0x18] sm:$0xff]
      %v1152 = vld [vmem:[%s1147 + $0x20] sm:$0xf]
      %s1153 = scalar_lea.vmem %s2, 1
      %v1154 = vld [vmem:[%s1153] sm:$0x1]
      %v1156 = vperm.slane %v1154, 0
      %v1159 = vsel %vm1062, %v1152, 0
      %1161 = vmatpush.msra.mxu0 0.0
      %1162 = vmatpush.msra.mxu0 0.0
      %1163 = vmatpush.msra.mxu0 0.0
      %1164 = vmatpush.msra.mxu0 0.0
      %1165 = vmatpush.msra.mxu0 0.0
      %1166 = vmatpush.msra.mxu0 0.0
      %1167 = vmatpush.msra.mxu0 0.0
      %1168 = vmatpush.msra.mxu0 0.0
      %1169 = vmatpush.msra.mxu0 0.0
      %1170 = vmatpush.msra.mxu0 0.0
      %1171 = vmatpush.msra.mxu0 0.0
      %1172 = vmatpush.msra.mxu0 %v1159
      %1173 = vmatpush.msra.mxu0 %v1151
      %1174 = vmatpush.msra.mxu0 %v1150
      %1175 = vmatpush.msra.mxu0 %v1149
      %1176 = vmatpush.msra.mxu0 %v1148
      %1177 = vmatmul.f32.gmra.mxu0 %v1015
      %v1178 = vpop.f32.mrf.mxu0
      %v1179 = vadd.f32 %v1156, %v1178
      %1180 = vmatmul.f32.gmra.mxu0 %v1018
      %v1181 = vpop.f32.mrf.mxu0
      %v1182 = vadd.f32 %v1156, %v1181
      %1183 = vmatmul.f32.gmra.mxu0 %v1021
      %v1184 = vpop.f32.mrf.mxu0
      %v1185 = vadd.f32 %v1156, %v1184
      %1186 = vmatmul.f32.gmra.mxu0 %v1024
      %v1187 = vpop.f32.mrf.mxu0
      %v1188 = vadd.f32 %v1156, %v1187
      %1189 = vmatmul.f32.gmra.mxu0 %v1027
      %v1190 = vpop.f32.mrf.mxu0
      %v1191 = vadd.f32 %v1156, %v1190
      %1192 = vmatmul.f32.gmra.mxu0 %v1030
      %v1193 = vpop.f32.mrf.mxu0
      %v1194 = vadd.f32 %v1156, %v1193
      %1195 = vmatmul.f32.gmra.mxu0 %v1033
      %v1196 = vpop.f32.mrf.mxu0
      %v1197 = vadd.f32 %v1156, %v1196
      %1198 = vmatmul.f32.gmra.mxu0 %v1036
      %v1199 = vpop.f32.mrf.mxu0
      %v1200 = vadd.f32 %v1156, %v1199
      %1201 = vmatmul.f32.gmra.mxu0 %v1039
      %v1202 = vpop.f32.mrf.mxu0
      %v1203 = vadd.f32 %v1156, %v1202
      %1204 = vmatmul.f32.gmra.mxu0 %v1042
      %v1205 = vpop.f32.mrf.mxu0
      %v1206 = vadd.f32 %v1156, %v1205
      %1207 = vmatmul.f32.gmra.mxu0 %v1045
      %v1208 = vpop.f32.mrf.mxu0
      %v1209 = vadd.f32 %v1156, %v1208
      %1210 = vmatmul.f32.gmra.mxu0 %v1048
      %v1211 = vpop.f32.mrf.mxu0
      %v1212 = vadd.f32 %v1156, %v1211
      %1213 = vmatmul.f32.gmra.mxu0 %v1051
      %v1214 = vpop.f32.mrf.mxu0
      %v1215 = vadd.f32 %v1156, %v1214
      %1216 = vmatmul.f32.gmra.mxu0 %v1054
      %v1217 = vpop.f32.mrf.mxu0
      %v1218 = vadd.f32 %v1156, %v1217
      %1219 = vmatmul.f32.gmra.mxu0 %v1057
      %v1220 = vpop.f32.mrf.mxu0
      %v1221 = vadd.f32 %v1156, %v1220
      %1222 = vmatmul.f32.gmra.mxu0 %v1060
      %v1223 = vpop.f32.mrf.mxu0
      %v1224 = vadd.f32 %v1156, %v1223
      %1225 = vdwg.mxu0
      %s1226 = scalar_lea.vmem %s208, 16
      %1227 = vst.msk [vmem:[%s1226] sm:$0xff] %vm919, %v1179
      %1228 = vst.msk [vmem:[%s1226 + $0x8] sm:$0xff] %vm919, %v1182
      %1229 = vst.msk [vmem:[%s1226 + $0x20] sm:$0xff] %vm919, %v1185
      %1230 = vst.msk [vmem:[%s1226 + $0x28] sm:$0xff] %vm919, %v1188
      %1231 = vst.msk [vmem:[%s1226 + $0x40] sm:$0xff] %vm919, %v1191
      %1232 = vst.msk [vmem:[%s1226 + $0x48] sm:$0xff] %vm919, %v1194
      %1233 = vst.msk [vmem:[%s1226 + $0x60] sm:$0xff] %vm919, %v1197
      %1234 = vst.msk [vmem:[%s1226 + $0x68] sm:$0xff] %vm919, %v1200
      %1235 = vst.msk [vmem:[%s1226 + $0x80] sm:$0xff] %vm919, %v1203
      %1236 = vst.msk [vmem:[%s1226 + $0x88] sm:$0xff] %vm919, %v1206
      %1237 = vst.msk [vmem:[%s1226 + $0xa0] sm:$0xff] %vm919, %v1209
      %1238 = vst.msk [vmem:[%s1226 + $0xa8] sm:$0xff] %vm919, %v1212
      %1239 = vst.msk [vmem:[%s1226 + $0xc0] sm:$0xff] %vm919, %v1215
      %1240 = vst.msk [vmem:[%s1226 + $0xc8] sm:$0xff] %vm919, %v1218
      %1241 = vst.msk [vmem:[%s1226 + $0xe0] sm:$0xff] %vm919, %v1221
      %1242 = vst.msk [vmem:[%s1226 + $0xe8] sm:$0xff] %vm919, %v1224
      %s1243 = smul.u32 8, %s19
      %p1244 = scmp.lt.s32.totalorder %s18, 1
      %s1245 = scalar_select %p1244, %s18, 1
      %p1246 = scmp.lt.s32.totalorder %s1243, 15
      %s1247 = scalar_select %p1246, %s1243, 15
      %s1248 = smul.addr %s1247, 4
      %s1249 = smul.addr %s1245, 64
      %s1250 = sadd.s32 %s1248, %s1249
      %s1251 = smul.addr %s1250, 8
      %s1252 = scalar_lea.vmem %s3, %s1251
      // Predicated region
      $region33: #{unpooling_as_convolution.1} parent=31 // pred_check
        %p1253 = pneg %p116
      $region34: #{unpooling_as_convolution.1} parent=31 // pred_check_branch
        %1255 = sbr.rel (%p1253) target = $region36
      $region35: #{unpooling_as_convolution.1} parent=31 // pred_region
        %s1256 = smul.u32 8, %s19
      $region36: #{unpooling_as_convolution.1} parent=31 // pred_fallthru
        _
    $region32: #{unpooling_as_convolution.1} parent=5 // pred_fallthru
      _
    %p1257 = scmp.le.s32.totalorder 2, %s9
    // Predicated region
    $region37: #{unpooling_as_convolution.1} parent=5 // pred_check
      %p1258 = pneg %p1257
    $region38: #{unpooling_as_convolution.1} parent=5 // pred_check_branch
      %1260 = sbr.rel (%p1258) target = $region40
    $region39: #{unpooling_as_convolution.1} parent=5 // pred_region
      %s1261 = ssub.s32 %s9, 2
      // Predicated region
      $region41: #{unpooling_as_convolution.1} parent=39 // pred_check
        %p1262 = pneg %p122
      $region42: #{unpooling_as_convolution.1} parent=39 // pred_check_branch
        %1264 = sbr.rel (%p1262) target = $region44
      $region43: #{unpooling_as_convolution.1} parent=39 // pred_region
        %s1265 = smul.u32 8, %s21
        %p1266 = scmp.lt.s32.totalorder %s20, 1
        %s1267 = scalar_select %p1266, %s20, 1
        %p1268 = scmp.lt.s32.totalorder %s1265, 15
        %s1269 = scalar_select %p1268, %s1265, 15
        %s1270 = smul.addr %s1269, 4
        %s1271 = smul.addr %s1267, 64
        %s1272 = sadd.s32 %s1270, %s1271
        %s1273 = smul.addr %s1272, 8
        %s1274 = scalar_lea.vmem %s3, %s1273
      $region44: #{unpooling_as_convolution.1} parent=39 // pred_fallthru
        _
    $region40: #{unpooling_as_convolution.1} parent=5 // pred_fallthru
      _
  $region6: #{unpooling_as_convolution.1} parent=0 // loop_footer
    %s13 = sadd.s32 1, %s9
  $region7: #{unpooling_as_convolution.1} parent=0 // loop_footer_branch
    %8 = sbr.rel target = $region3
  $region8: #{unpooling_as_convolution.1} parent=0 // loop_exit
    _

</llo_original>
